<compile_context>
chip_gen: v6e
topology: v6e:2x2x1
jax: 0.10.0
libtpu: 0.0.40
codegen_flags: <defaults>
</compile_context>

<pallas_src>
import functools
import math

import jax
import jax.numpy as jnp
from jax.experimental import pallas as pl
from jax.experimental.pallas import tpu as pltpu


def _round_up(x, m):
    return ((x + m - 1) // m) * m


def _default_vmem_limit():
    """~75% of per-core VMEM (v5e/v6e: ~96 MiB, v7x: ~48 MiB), capped at 100 MiB."""
    phys = 64 * 1024 * 1024  # conservative fallback (v7x per-TC)
    try:
        phys = int(pltpu.get_tpu_info().vmem_capacity_bytes)
    except Exception:
        pass
    return max(32 * 1024 * 1024, min(int(phys * 0.75), 100 * 1024 * 1024))


def _gelu(h, approx):
    if approx:
        # tanh approximation -> transcendental goes to the EUP slot.
        c = math.sqrt(2.0 / math.pi)
        return 0.5 * h * (1.0 + jnp.tanh(c * (h + 0.044715 * h * h * h)))
    # Exact erf GELU, matching torch.nn.functional.gelu default.
    return 0.5 * h * (1.0 + jax.lax.erf(h * (1.0 / math.sqrt(2.0))))


def _mlp_kernel_acc(x_ref, w1_ref, b1_ref, w2_ref, b2_ref, o_ref, acc_ref, *,
                    approx_gelu=False):
    """out = GELU(x @ w1 + b1) @ w2 + b2, f32 scratch accumulator (non-f32 out).

    Grid = (M//tm, F//tf); F is the inner reduction axis, so acc_ref (tm, H_pad)
    is resident across the inner loop.  It is initialized with b2 at f==0 and
    only cast at f==last (no extra bias-add pass at finalize).
    """
    f = pl.program_id(1)

    @pl.when(f == 0)
    def _init():
        acc_ref[...] = jnp.broadcast_to(b2_ref[...], acc_ref.shape).astype(jnp.float32)

    h = jnp.dot(x_ref[...], w1_ref[...], preferred_element_type=jnp.float32)
    h = h + b1_ref[...]
    h = _gelu(h, approx_gelu)
    # Dropout == identity (eval mode).
    acc_ref[...] += jnp.dot(
        h.astype(w2_ref.dtype), w2_ref[...], preferred_element_type=jnp.float32
    )

    @pl.when(f == pl.num_programs(1) - 1)
    def _finalize():
        o_ref[...] = acc_ref[...].astype(o_ref.dtype)


def _mlp_kernel_direct(x_ref, w1_ref, b1_ref, w2_ref, b2_ref, o_ref, *,
                       approx_gelu=False):
    """Same as above but accumulates directly into the resident f32 output tile."""
    f = pl.program_id(1)

    @pl.when(f == 0)
    def _init():
        o_ref[...] = jnp.broadcast_to(b2_ref[...], o_ref.shape).astype(o_ref.dtype)

    h = jnp.dot(x_ref[...], w1_ref[...], preferred_element_type=jnp.float32)
    h = h + b1_ref[...]
    h = _gelu(h, approx_gelu)
    # Dropout == identity (eval mode).
    o_ref[...] += jnp.dot(
        h.astype(w2_ref.dtype), w2_ref[...], preferred_element_type=jnp.float32
    )


class TransformerMLPPallas:
    """Pallas TPU forward for TransformerMLP.

    Weights are padded (lane-dense, multiples of 128) and cast to the compute
    dtype exactly once here, so repeated forward calls pay no per-call weight
    re-streaming / re-casting cost.
    """

    _TM_CANDIDATES = (1024, 768, 512, 384, 256, 192, 128, 64, 32, 16, 8)

    def __init__(self, w1, b1, w2, b2, *,
                 compute_dtype=jnp.bfloat16,      # bf16 MXU inputs, f32 accumulation
                 out_dtype=None,                  # None -> x.dtype per call
                 tf=512,                          # FF-dim tile (multiple of 128)
                 tm_max=1024,
                 min_m_tiles=1,                   # set 2 on v7x (2 TCs share the parallel axis)
                 weight_buffer_count=None,        # e.g. 3 on v5e if weight DMA is exposed
                 gelu_approx=False,
                 vmem_limit_bytes=None):
        H, F = w1.shape
        assert b1.shape == (F,) and w2.shape == (F, H) and b2.shape == (H,)

        self.H, self.F = H, F
        self.compute_dtype = compute_dtype
        self.out_dtype = out_dtype
        self.tm_max = tm_max
        self.min_m_tiles = min_m_tiles
        self.weight_buffer_count = weight_buffer_count
        self.gelu_approx = gelu_approx
        self.vmem_limit_bytes = (vmem_limit_bytes if vmem_limit_bytes is not None
                                 else _default_vmem_limit())

        # Lane-dense padding.  F is padded up to a multiple of tf (a few percent
        # of padded FLOPs beats collapsing tf to 128).
        self.H_pad = _round_up(H, 128)
        tf = _round_up(max(tf, 128), 128)
        tf = min(tf, _round_up(F, 128))
        self.tf = tf
        self.F_pad = _round_up(F, tf)

        # Pad + cast weights ONCE (zero-padding is neutral: GELU(0)=0 and the
        # padded w2 rows / output columns are zero or sliced off).
        self.w1 = jnp.pad(w1, ((0, self.H_pad - H), (0, self.F_pad - F))).astype(compute_dtype)
        self.w2 = jnp.pad(w2, ((0, self.F_pad - F), (0, self.H_pad - H))).astype(compute_dtype)
        self.b1 = jnp.pad(b1.reshape(1, F), ((0, 0), (0, self.F_pad - F))).astype(jnp.float32)
        self.b2 = jnp.pad(b2.reshape(1, H), ((0, 0), (0, self.H_pad - H))).astype(jnp.float32)

    def _choose_tm(self, M, out_dtype):
        """Largest tm that fits the VMEM budget (weight tiles are fixed cost)."""
        cdt_b = jnp.dtype(self.compute_dtype).itemsize
        out_b = jnp.dtype(out_dtype).itemsize
        use_acc = jnp.dtype(out_dtype) != jnp.dtype(jnp.float32)
        nbuf_w = self.weight_buffer_count or 2

        budget = int(self.vmem_limit_bytes * 0.9)
        # N-buffered weight tiles + (sublane-padded) bias tiles: independent of tm.
        fixed = nbuf_w * (self.H_pad * self.tf + self.tf * self.H_pad) * cdt_b
        fixed += 2 * 8 * (self.tf + self.H_pad) * 4
        # Per-M-row cost: x tile (2 bufs), out tile (2 bufs), optional f32 acc.
        per_row = 2 * self.H_pad * cdt_b + 2 * self.H_pad * out_b
        if use_acc:
            per_row += self.H_pad * 4

        m8 = _round_up(max(M, 1), 8)
        tm = 8
        for cand in self._TM_CANDIDATES:
            if cand > self.tm_max:
                continue
            t = min(cand, m8)
            if fixed + t * per_row <= budget:
                tm = t
                break

        # Megacore (v7x): keep the "parallel" M axis at least min_m_tiles wide.
        while self.min_m_tiles > 1 and tm > 8 and -(-M // tm) < self.min_m_tiles:
            tm = max(8, _round_up(tm // 2, 8))
        return tm, use_acc

    def __call__(self, x):
        B, S, H = x.shape
        assert H == self.H, f"expected hidden dim {self.H}, got {H}"
        out_dtype = self.out_dtype if self.out_dtype is not None else x.dtype
        M = B * S

        tm, use_acc = self._choose_tm(M, out_dtype)
        M_pad = _round_up(M, tm)
        H_pad, F_pad, tf = self.H_pad, self.F_pad, self.tf

        x2d = x.reshape(M, H)
        if (M_pad != M) or (H_pad != H):
            x2d = jnp.pad(x2d, ((0, M_pad - M), (0, H_pad - H)))
        if x2d.dtype != self.compute_dtype:
            x2d = x2d.astype(self.compute_dtype)

        grid = (M_pad // tm, F_pad // tf)

        wb = self.weight_buffer_count

        def wspec(shape, imap):
            if wb:
                return pl.BlockSpec(shape, imap, pipeline_mode=pl.Buffered(wb))
            return pl.BlockSpec(shape, imap)

        in_specs = [
            pl.BlockSpec((tm, H_pad), lambda i, f: (i, 0)),   # x tile (held across F)
            wspec((H_pad, tf), lambda i, f: (0, f)),          # w1 tile
            pl.BlockSpec((1, tf), lambda i, f: (0, f)),       # b1 tile
            wspec((tf, H_pad), lambda i, f: (f, 0)),          # w2 tile
            pl.BlockSpec((1, H_pad), lambda i, f: (0, 0)),    # b2 (resident)
        ]
        out_spec = pl.BlockSpec((tm, H_pad), lambda i, f: (i, 0))

        if use_acc:
            kernel = functools.partial(_mlp_kernel_acc, approx_gelu=self.gelu_approx)
            scratch = [pltpu.VMEM((tm, H_pad), jnp.float32)]
        else:
            kernel = functools.partial(_mlp_kernel_direct, approx_gelu=self.gelu_approx)
            scratch = []

        out_p = pl.pallas_call(
            kernel,
            out_shape=jax.ShapeDtypeStruct((M_pad, H_pad), out_dtype),
            grid_spec=pltpu.PrefetchScalarGridSpec(
                num_scalar_prefetch=0,
                grid=grid,
                in_specs=in_specs,
                out_specs=out_spec,
                scratch_shapes=scratch,
            ),
            compiler_params=pltpu.CompilerParams(
                dimension_semantics=("parallel", "arbitrary"),
                vmem_limit_bytes=self.vmem_limit_bytes,
            ),
        )(x2d, self.w1, self.b1, self.w2, self.b2)

        return out_p[:M, :H].reshape(B, S, H)


def init_params(key, hidden_dim, ff_dim, dtype=jnp.float32):
    """Deterministic init mimicking nn.Linear (uniform +/- 1/sqrt(fan_in))."""
    k1, k2, k3, k4 = jax.random.split(key, 4)
    bound1 = 1.0 / math.sqrt(hidden_dim)
    bound2 = 1.0 / math.sqrt(ff_dim)
    # fc1.weight in torch is (ff_dim, hidden_dim); we store its transpose (H, F)
    w1 = jax.random.uniform(k1, (hidden_dim, ff_dim), dtype, -bound1, bound1)
    b1 = jax.random.uniform(k2, (ff_dim,), dtype, -bound1, bound1)
    # fc2.weight is (hidden_dim, ff_dim); store transpose (F, H)
    w2 = jax.random.uniform(k3, (ff_dim, hidden_dim), dtype, -bound2, bound2)
    b2 = jax.random.uniform(k4, (hidden_dim,), dtype, -bound2, bound2)
    return w1, b1, w2, b2


def _ref_mlp(x, w1, b1, w2, b2):
    h = x @ w1 + b1
    h = 0.5 * h * (1.0 + jax.lax.erf(h / math.sqrt(2.0)))
    return h @ w2 + b2


if __name__ == "__main__":
    key = jax.random.PRNGKey(0)

    # Test 1: f32 MXU path (tight bit-check), single-tile grid, direct
    # accumulate-into-o_ref kernel (f32 output -> no acc scratch).
    batch, seq, hidden_dim, ff_dim = 2, 8, 32, 64
    k1, k2, k3, k4 = jax.random.split(key, 4)
    x = jax.random.normal(k1, (batch, seq, hidden_dim), jnp.float32)
    w1, b1, w2, b2 = init_params(k2, hidden_dim, ff_dim)

    mlp_f32 = TransformerMLPPallas(w1, b1, w2, b2, compute_dtype=jnp.float32, tf=128)
    out = mlp_f32(x)
    jax.block_until_ready(out)
    ref = _ref_mlp(x, w1, b1, w2, b2)
    assert out.shape == ref.shape
    assert jnp.allclose(out, ref, atol=1e-5, rtol=1e-5), "mismatch vs reference (test 1)"

    # Test 2: default bf16 MXU inputs + f32 accumulation; multi-tile grid
    # (2 M-tiles x 2 F-tiles) exercises the init / accumulate path and the
    # min_m_tiles (megacore) knob.
    hidden_dim2, ff_dim2 = 32, 256
    x2 = jax.random.normal(k3, (batch, seq, hidden_dim2), jnp.float32)
    w1b, b1b, w2b, b2b = init_params(k4, hidden_dim2, ff_dim2)

    mlp_bf16 = TransformerMLPPallas(w1b, b1b, w2b, b2b, tf=128, tm_max=8, min_m_tiles=2)
    out2 = mlp_bf16(x2)
    jax.block_until_ready(out2)
    ref2 = _ref_mlp(x2, w1b, b1b, w2b, b2b)
    assert jnp.allclose(out2, ref2, atol=5e-2, rtol=5e-2), "mismatch vs reference (test 2)"

    # Test 3: bf16 output -> f32 acc-scratch + finalize-cast kernel variant.
    x3 = x2.astype(jnp.bfloat16)
    out3 = mlp_bf16(x3)
    jax.block_until_ready(out3)
    assert out3.dtype == jnp.bfloat16
    assert jnp.allclose(out3.astype(jnp.float32), ref2, atol=1e-1, rtol=1e-1), (
        "mismatch vs reference (test 3)")

    print("KERNEL_OK")
</pallas_src>

<mosaic_0001>
module attributes {stable_mosaic.version = 11 : i64} {
  func.func @_mlp_kernel_direct(%arg0: i32, %arg1: i32, %arg2: memref<16x128xf32, #tpu.memory_space<vmem>>, %arg3: memref<128x128xf32, #tpu.memory_space<vmem>>, %arg4: memref<1x128xf32, #tpu.memory_space<vmem>>, %arg5: memref<128x128xf32, #tpu.memory_space<vmem>>, %arg6: memref<1x128xf32, #tpu.memory_space<vmem>>, %arg7: memref<16x128xf32, #tpu.memory_space<vmem>>) attributes {dimension_semantics = [#tpu.dimension_semantics<parallel>, #tpu.dimension_semantics<arbitrary>], iteration_bounds = array<i64: 1, 1>, scalar_prefetch = 0 : i64, scratch_operands = 0 : i64, tpu.core_type = #tpu.core_type<tc>, window_params = [{transform_indices = @transform_0, window_bounds = array<i64: 16, 128>}, {transform_indices = @transform_1, window_bounds = array<i64: 128, 128>}, {transform_indices = @transform_2, window_bounds = array<i64: 1, 128>}, {transform_indices = @transform_3, window_bounds = array<i64: 128, 128>}, {pipeline_mode = #tpu.pipeline_mode<synchronous>, transform_indices = @transform_4, window_bounds = array<i64: 1, 128>}, {transform_indices = @transform_5, window_bounds = array<i64: 16, 128>}]} {
    %c0_i32 = arith.constant 0 : i32
    %0 = arith.cmpi eq, %arg1, %c0_i32 : i32
    %1 = arith.extui %0 : i1 to i32
    %c0_i32_0 = arith.constant 0 : i32
    %2 = arith.cmpi ne, %1, %c0_i32_0 : i32
    scf.if %2 {
      %c0_16 = arith.constant 0 : index
      %c0_17 = arith.constant 0 : index
      %22 = vector.load %arg6[%c0_16, %c0_17] : memref<1x128xf32, #tpu.memory_space<vmem>>, vector<1x128xf32>
      %23 = vector.shape_cast %22 : vector<1x128xf32> to vector<1x128xf32>
      %24 = vector.broadcast %23 : vector<1x128xf32> to vector<16x128xf32>
      %c0_18 = arith.constant 0 : index
      %c0_19 = arith.constant 0 : index
      %25 = vector.load %arg7[%c0_18, %c0_19] : memref<16x128xf32, #tpu.memory_space<vmem>>, vector<16x128xf32>
      tpu.vector_store %arg7[%c0_18, %c0_19], %24 {strides = array<i32>} : memref<16x128xf32, #tpu.memory_space<vmem>>, vector<16x128xf32>,
    } else {
    }
    %c0 = arith.constant 0 : index
    %c0_1 = arith.constant 0 : index
    %3 = vector.load %arg2[%c0, %c0_1] : memref<16x128xf32, #tpu.memory_space<vmem>>, vector<16x128xf32>
    %c0_2 = arith.constant 0 : index
    %c0_3 = arith.constant 0 : index
    %4 = vector.load %arg3[%c0_2, %c0_3] : memref<128x128xf32, #tpu.memory_space<vmem>>, vector<128x128xf32>
    %cst = arith.constant dense<0.000000e+00> : vector<16x128xf32>
    %5 = tpu.matmul %3, %4, %cst {dimension_numbers = #tpu.dot_dimension_numbers<[1], [0], [0], [1], [0, 0, 1, 1], [], []>} : vector<16x128xf32>, vector<128x128xf32>, vector<16x128xf32> -> vector<16x128xf32>
    %c0_4 = arith.constant 0 : index
    %c0_5 = arith.constant 0 : index
    %6 = vector.load %arg4[%c0_4, %c0_5] : memref<1x128xf32, #tpu.memory_space<vmem>>, vector<1x128xf32>
    %7 = vector.broadcast %6 : vector<1x128xf32> to vector<16x128xf32>
    %8 = arith.addf %5, %7 : vector<16x128xf32>
    %cst_6 = arith.constant 5.000000e-01 : f32
    %9 = vector.broadcast %cst_6 : f32 to vector<16x128xf32>
    %10 = arith.mulf %9, %8 : vector<16x128xf32>
    %cst_7 = arith.constant 0.707106769 : f32
    %11 = vector.broadcast %cst_7 : f32 to vector<16x128xf32>
    %12 = arith.mulf %8, %11 : vector<16x128xf32>
    %13 = math.erf %12 : vector<16x128xf32>
    %cst_8 = arith.constant 1.000000e+00 : f32
    %14 = vector.broadcast %cst_8 : f32 to vector<16x128xf32>
    %15 = arith.addf %14, %13 : vector<16x128xf32>
    %16 = arith.mulf %10, %15 : vector<16x128xf32>
    %c0_9 = arith.constant 0 : index
    %c0_10 = arith.constant 0 : index
    %17 = vector.load %arg7[%c0_9, %c0_10] : memref<16x128xf32, #tpu.memory_space<vmem>>, vector<16x128xf32>
    %c0_11 = arith.constant 0 : index
    %c0_12 = arith.constant 0 : index
    %18 = vector.load %arg5[%c0_11, %c0_12] : memref<128x128xf32, #tpu.memory_space<vmem>>, vector<128x128xf32>
    %cst_13 = arith.constant dense<0.000000e+00> : vector<16x128xf32>
    %19 = tpu.matmul %16, %18, %cst_13 {dimension_numbers = #tpu.dot_dimension_numbers<[1], [0], [0], [1], [0, 0, 1, 1], [], []>} : vector<16x128xf32>, vector<128x128xf32>, vector<16x128xf32> -> vector<16x128xf32>
    %20 = arith.addf %17, %19 : vector<16x128xf32>
    %c0_14 = arith.constant 0 : index
    %c0_15 = arith.constant 0 : index
    %21 = vector.load %arg7[%c0_14, %c0_15] : memref<16x128xf32, #tpu.memory_space<vmem>>, vector<16x128xf32>
    tpu.vector_store %arg7[%c0_14, %c0_15], %20 {strides = array<i32>} : memref<16x128xf32, #tpu.memory_space<vmem>>, vector<16x128xf32>,
    return
  }
  func.func @transform_0(%arg0: i32, %arg1: i32) -> (i32, i32) {
    %c0_i32 = arith.constant 0 : i32
    %c0_i32_0 = arith.constant 0 : i32
    return %arg0, %c0_i32 : i32, i32
  }
  func.func @transform_1(%arg0: i32, %arg1: i32) -> (i32, i32) {
    %c0_i32 = arith.constant 0 : i32
    %c0_i32_0 = arith.constant 0 : i32
    return %c0_i32, %arg1 : i32, i32
  }
  func.func @transform_2(%arg0: i32, %arg1: i32) -> (i32, i32) {
    %c0_i32 = arith.constant 0 : i32
    %c0_i32_0 = arith.constant 0 : i32
    return %c0_i32, %arg1 : i32, i32
  }
  func.func @transform_3(%arg0: i32, %arg1: i32) -> (i32, i32) {
    %c0_i32 = arith.constant 0 : i32
    %c0_i32_0 = arith.constant 0 : i32
    return %arg1, %c0_i32 : i32, i32
  }
  func.func @transform_4(%arg0: i32, %arg1: i32) -> (i32, i32) {
    %c0_i32 = arith.constant 0 : i32
    %c0_i32_0 = arith.constant 0 : i32
    %c0_i32_1 = arith.constant 0 : i32
    return %c0_i32, %c0_i32_0 : i32, i32
  }
  func.func @transform_5(%arg0: i32, %arg1: i32) -> (i32, i32) {
    %c0_i32 = arith.constant 0 : i32
    %c0_i32_0 = arith.constant 0 : i32
    return %arg0, %c0_i32 : i32, i32
  }
}

</mosaic_0001>

<llo_original>
// kernel: tpu_custom_call.1
$region0: #{tpu_custom_call.1}
  #allocation0 [shape = 'u32[]', space=smem, size = 0x4, offset = 0x4, fixed_abs, tag = 'smem constant byte address 0x4 - core index']
  #allocation1 [shape = 'u32[144,128]{1,0:T(1,128)}', space=vmem, size = 0x12000, scoped, tag = 'internal scratch']
  %s0 = inlined_call_operand.hbm [shape: f32[16,128], index: 0, kind: input, shape index: {}]
  %s1 = inlined_call_operand.hbm [shape: f32[128,128], index: 1, kind: input, shape index: {}]
  %s2 = inlined_call_operand.vmem [shape: f32[1,128], index: 2, kind: input, shape index: {}]
  %s3 = inlined_call_operand.hbm [shape: f32[128,128], index: 3, kind: input, shape index: {}]
  %s4 = inlined_call_operand.vmem [shape: f32[1,128], index: 4, kind: input, shape index: {}]
  %s5 = inlined_call_operand.hbm [shape: f32[16,128], index: 5, kind: output, shape index: {}]
  %s6 = sld [smem:[#allocation0]]
  $region46: #{tpu_custom_call.1} parent=0
    _
  %s8 = ssub.s32 1, %s6
  %s9 = scalar_select 0, %s8, %s6
  $region1: #{tpu_custom_call.1} parent=0
    #allocation2 [shape = 'u8[8192]{0}', space=vmem, size = 0x2000, scoped, tag = 'input window, operand 0, single buffered']
    #allocation3 [shape = 's32[1]{0}', space=sflag, size = 0x4, scoped, tag = 'scoped memory for tpu_custom_call.1']
    #allocation4 [shape = 's32[1]{0}', space=sflag, size = 0x4, scoped, tag = 'scoped memory for tpu_custom_call.1']
    #allocation5 [shape = 'u8[65536]{0}', space=vmem, size = 0x10000, scoped, tag = 'input window, operand 1, single buffered']
    #allocation6 [shape = 's32[1]{0}', space=sflag, size = 0x4, scoped, tag = 'scoped memory for tpu_custom_call.1']
    #allocation7 [shape = 'u8[65536]{0}', space=vmem, size = 0x10000, scoped, tag = 'input window, operand 3, single buffered']
    #allocation8 [shape = 'u8[8192]{0}', space=vmem, size = 0x2000, scoped, tag = 'output window, operand 0, single buffered']
    %10 = vsyncpa [#allocation3], 0
    %11 = vsyncpa [#allocation6], 0
    %12 = vsyncpa [#allocation4], 0
    // Predicated region
    $region2: #{tpu_custom_call.1} parent=1 // pred_check
      _
    $region3: #{tpu_custom_call.1} parent=1 // pred_check_branch
      %14 = sbr.rel (0) target = $region5
    $region4: #{tpu_custom_call.1} parent=1 // pred_region
      %s16 = ssub.s32 256, 256
      %17 = vsyncadd [#allocation3], %s16
      %s18 = sshll.u32 [#allocation2], 4
      %s19 = int_to_ptr.vmem [resolvable:$true] %s18
      %24 = dma.hbm_to_vmem [thread:$0]  %s0, 256, %s19, [#allocation3], 128, 128, 8
    $region5: #{tpu_custom_call.1} parent=1 // pred_fallthru
      _
    // Predicated region
    $region6: #{tpu_custom_call.1} parent=1 // pred_check
      _
    $region7: #{tpu_custom_call.1} parent=1 // pred_check_branch
      %26 = sbr.rel (0) target = $region9
    $region8: #{tpu_custom_call.1} parent=1 // pred_region
      %s28 = ssub.s32 2048, 2048
      %29 = vsyncadd [#allocation6], %s28
      %s30 = sshll.u32 [#allocation5], 4
      %s31 = int_to_ptr.vmem [resolvable:$true] %s30
      %36 = dma.hbm_to_vmem [thread:$0]  %s1, 2048, %s31, [#allocation6], 128, 128, 8
    $region9: #{tpu_custom_call.1} parent=1 // pred_fallthru
      _
    // Predicated region
    $region10: #{tpu_custom_call.1} parent=1 // pred_check
      _
    $region11: #{tpu_custom_call.1} parent=1 // pred_check_branch
      %38 = sbr.rel (0) target = $region13
    $region12: #{tpu_custom_call.1} parent=1 // pred_region
      _
    $region13: #{tpu_custom_call.1} parent=1 // pred_fallthru
      _
    // Predicated region
    $region14: #{tpu_custom_call.1} parent=1 // pred_check
      _
    $region15: #{tpu_custom_call.1} parent=1 // pred_check_branch
      %40 = sbr.rel (0) target = $region17
    $region16: #{tpu_custom_call.1} parent=1 // pred_region
      %s42 = ssub.s32 2048, 2048
      %43 = vsyncadd [#allocation6], %s42
      %s44 = sshll.u32 [#allocation7], 4
      %s45 = int_to_ptr.vmem [resolvable:$true] %s44
      %50 = dma.hbm_to_vmem [thread:$0]  %s3, 2048, %s45, [#allocation6], 128, 128, 8
    $region17: #{tpu_custom_call.1} parent=1 // pred_fallthru
      _
    // Predicated region
    $region18: #{tpu_custom_call.1} parent=1 // pred_check
      _
    $region19: #{tpu_custom_call.1} parent=1 // pred_check_branch
      %52 = sbr.rel (0) target = $region21
    $region20: #{tpu_custom_call.1} parent=1 // pred_region
      _
    $region21: #{tpu_custom_call.1} parent=1 // pred_fallthru
      _
    // Predicated region
    $region22: #{tpu_custom_call.1} parent=1 // pred_check
      _
    $region23: #{tpu_custom_call.1} parent=1 // pred_check_branch
      %54 = sbr.rel (0) target = $region25
    $region24: #{tpu_custom_call.1} parent=1 // pred_region
      %55 = dma.done [#allocation3], 256
    $region25: #{tpu_custom_call.1} parent=1 // pred_fallthru
      _
    // Predicated region
    $region26: #{tpu_custom_call.1} parent=1 // pred_check
      _
    $region27: #{tpu_custom_call.1} parent=1 // pred_check_branch
      %57 = sbr.rel (0) target = $region29
    $region28: #{tpu_custom_call.1} parent=1 // pred_region
      %58 = dma.done [#allocation6], 2048
    $region29: #{tpu_custom_call.1} parent=1 // pred_fallthru
      _
    // Predicated region
    $region30: #{tpu_custom_call.1} parent=1 // pred_check
      _
    $region31: #{tpu_custom_call.1} parent=1 // pred_check_branch
      %60 = sbr.rel (0) target = $region33
    $region32: #{tpu_custom_call.1} parent=1 // pred_region
      %61 = dma.done [#allocation6], 2048
    $region33: #{tpu_custom_call.1} parent=1 // pred_fallthru
      _
    %p62 = scmp.eq.s32.totalorder 0, 0
    // Predicated region
    $region34: #{tpu_custom_call.1} parent=1 // pred_check
      %p63 = pneg %p62
    $region35: #{tpu_custom_call.1} parent=1 // pred_check_branch
      %65 = sbr.rel (%p63) target = $region37
    $region36: #{tpu_custom_call.1} parent=1 // pred_region
      %v66 = vld [vmem:[%s4] sm:$0x1]
      %v68 = vlaneseq
      %v69 = vshrl.u32 %v68, 7
      %v70 = vsub.s32 0, %v69
      %v71 = vrot.slane %v66, %v70
      %73 = vst [vmem:[#allocation8] sm:$0xff] %v71
      %74 = vst [vmem:[#allocation8 + $0x8] sm:$0xff] %v71
    $region37: #{tpu_custom_call.1} parent=1 // pred_fallthru
      _
    %v75 = vld [vmem:[#allocation2] sm:$0xff]
    %v76 = vld [vmem:[#allocation2 + $0x8] sm:$0xff]
    %v77 = vld [vmem:[#allocation5] sm:$0xff]
    %v78 = vld [vmem:[#allocation5 + $0x8] sm:$0xff]
    %v79 = vld [vmem:[#allocation5 + $0x10] sm:$0xff]
    %v80 = vld [vmem:[#allocation5 + $0x18] sm:$0xff]
    %v81 = vld [vmem:[#allocation5 + $0x20] sm:$0xff]
    %v82 = vld [vmem:[#allocation5 + $0x28] sm:$0xff]
    %v83 = vld [vmem:[#allocation5 + $0x30] sm:$0xff]
    %v84 = vld [vmem:[#allocation5 + $0x38] sm:$0xff]
    %v85 = vld [vmem:[#allocation5 + $0x40] sm:$0xff]
    %v86 = vld [vmem:[#allocation5 + $0x48] sm:$0xff]
    %v87 = vld [vmem:[#allocation5 + $0x50] sm:$0xff]
    %v88 = vld [vmem:[#allocation5 + $0x58] sm:$0xff]
    %v89 = vld [vmem:[#allocation5 + $0x60] sm:$0xff]
    %v90 = vld [vmem:[#allocation5 + $0x68] sm:$0xff]
    %v91 = vld [vmem:[#allocation5 + $0x70] sm:$0xff]
    %v92 = vld [vmem:[#allocation5 + $0x78] sm:$0xff]
    %v93 = vld [vmem:[%s2] sm:$0x1]
    %v95 = vlaneseq
    %v96 = vshrl.u32 %v95, 7
    %v97 = vsub.s32 0, %v96
    %v98 = vrot.slane %v93, %v97
    %100 = vmatprep.subr.mxu0 0.0
    %101 = vmatpush1.msra.mxu0 %v92
    %102 = vmatprep.subr.mxu0 0.0
    %103 = vmatpush1.msra.mxu0 %v91
    %104 = vmatprep.subr.mxu0 0.0
    %105 = vmatpush1.msra.mxu0 %v90
    %106 = vmatprep.subr.mxu0 0.0
    %107 = vmatpush1.msra.mxu0 %v89
    %108 = vmatprep.subr.mxu0 0.0
    %109 = vmatpush1.msra.mxu0 %v88
    %110 = vmatprep.subr.mxu0 0.0
    %111 = vmatpush1.msra.mxu0 %v87
    %112 = vmatprep.subr.mxu0 0.0
    %113 = vmatpush1.msra.mxu0 %v86
    %114 = vmatprep.subr.mxu0 0.0
    %115 = vmatpush1.msra.mxu0 %v85
    %116 = vmatprep.subr.mxu0 0.0
    %117 = vmatpush1.msra.mxu0 %v84
    %118 = vmatprep.subr.mxu0 0.0
    %119 = vmatpush1.msra.mxu0 %v83
    %120 = vmatprep.subr.mxu0 0.0
    %121 = vmatpush1.msra.mxu0 %v82
    %122 = vmatprep.subr.mxu0 0.0
    %123 = vmatpush1.msra.mxu0 %v81
    %124 = vmatprep.subr.mxu0 0.0
    %125 = vmatpush1.msra.mxu0 %v80
    %126 = vmatprep.subr.mxu0 0.0
    %127 = vmatpush1.msra.mxu0 %v79
    %128 = vmatprep.subr.mxu0 0.0
    %129 = vmatpush1.msra.mxu0 %v78
    %130 = vmatprep.subr.mxu0 0.0
    %131 = vmatpush1.msra.mxu0 %v77
    %132 = vmatprep.subr.mxu0 0.0
    %133 = vmatpush2.msra.mxu0 0.0
    %134 = vmatprep.subr.mxu0 0.0
    %135 = vmatpush2.msra.mxu0 0.0
    %136 = vmatprep.subr.mxu0 0.0
    %137 = vmatpush2.msra.mxu0 0.0
    %138 = vmatprep.subr.mxu0 0.0
    %139 = vmatpush2.msra.mxu0 0.0
    %140 = vmatprep.subr.mxu0 0.0
    %141 = vmatpush2.msra.mxu0 0.0
    %142 = vmatprep.subr.mxu0 0.0
    %143 = vmatpush2.msra.mxu0 0.0
    %144 = vmatprep.subr.mxu0 0.0
    %145 = vmatpush2.msra.mxu0 0.0
    %146 = vmatprep.subr.mxu0 0.0
    %147 = vmatpush2.msra.mxu0 0.0
    %148 = vmatprep.subr.mxu0 0.0
    %149 = vmatpush2.msra.mxu0 0.0
    %150 = vmatprep.subr.mxu0 0.0
    %151 = vmatpush2.msra.mxu0 0.0
    %152 = vmatprep.subr.mxu0 0.0
    %153 = vmatpush2.msra.mxu0 0.0
    %154 = vmatprep.subr.mxu0 0.0
    %155 = vmatpush2.msra.mxu0 0.0
    %156 = vmatprep.subr.mxu0 0.0
    %157 = vmatpush2.msra.mxu0 0.0
    %158 = vmatprep.subr.mxu0 0.0
    %159 = vmatpush2.msra.mxu0 0.0
    %160 = vmatprep.subr.mxu0 0.0
    %161 = vmatpush2.msra.mxu0 0.0
    %162 = vmatprep.subr.mxu0 0.0
    %163 = vmatpush2.msra.mxu0 0.0
    %164 = vmatprep.mubr.f32.mxu0 0.0
    %165 = vmatmul.mubr.f32.gmra.mxu0 %v75
    %v166 = vpop.f32.mrf.mxu0
    %v167 = vadd.f32 %v98, %v166
    %v168 = vpop.f32.mrf.mxu0
    %169 = vmatprep.mubr.f32.mxu0 0.0
    %170 = vmatmul.mubr.f32.gmra.mxu0 %v76
    %v171 = vpop.f32.mrf.mxu0
    %v172 = vadd.f32 %v98, %v171
    %v173 = vpop.f32.mrf.mxu0
    %174 = vdwg.mxu0
    %v175 = vmul.f32 %v167, 0.5
    %v176 = vmul.f32 %v172, 0.5
    %v177 = vmul.f32 %v167, 0.70710677
    %v178 = vmul.f32 %v172, 0.70710677
    %v179 = verf.f32.pop %v177
    %v180 = verf.f32.pop %v178
    %v181 = vadd.f32 %v179, 1.0
    %v182 = vadd.f32 %v180, 1.0
    %v183 = vmul.f32 %v175, %v181
    %v184 = vmul.f32 %v176, %v182
    %v185 = vld [vmem:[#allocation8] sm:$0xff]
    %v186 = vld [vmem:[#allocation8 + $0x8] sm:$0xff]
    %v187 = vld [vmem:[#allocation7] sm:$0xff]
    %v188 = vld [vmem:[#allocation7 + $0x8] sm:$0xff]
    %v189 = vld [vmem:[#allocation7 + $0x10] sm:$0xff]
    %v190 = vld [vmem:[#allocation7 + $0x18] sm:$0xff]
    %v191 = vld [vmem:[#allocation7 + $0x20] sm:$0xff]
    %v192 = vld [vmem:[#allocation7 + $0x28] sm:$0xff]
    %v193 = vld [vmem:[#allocation7 + $0x30] sm:$0xff]
    %v194 = vld [vmem:[#allocation7 + $0x38] sm:$0xff]
    %v195 = vld [vmem:[#allocation7 + $0x40] sm:$0xff]
    %v196 = vld [vmem:[#allocation7 + $0x48] sm:$0xff]
    %v197 = vld [vmem:[#allocation7 + $0x50] sm:$0xff]
    %v198 = vld [vmem:[#allocation7 + $0x58] sm:$0xff]
    %v199 = vld [vmem:[#allocation7 + $0x60] sm:$0xff]
    %v200 = vld [vmem:[#allocation7 + $0x68] sm:$0xff]
    %v201 = vld [vmem:[#allocation7 + $0x70] sm:$0xff]
    %v202 = vld [vmem:[#allocation7 + $0x78] sm:$0xff]
    %203 = vmatprep.subr.mxu0 0.0
    %204 = vmatpush1.msra.mxu0 %v202
    %205 = vmatprep.subr.mxu0 0.0
    %206 = vmatpush1.msra.mxu0 %v201
    %207 = vmatprep.subr.mxu0 0.0
    %208 = vmatpush1.msra.mxu0 %v200
    %209 = vmatprep.subr.mxu0 0.0
    %210 = vmatpush1.msra.mxu0 %v199
    %211 = vmatprep.subr.mxu0 0.0
    %212 = vmatpush1.msra.mxu0 %v198
    %213 = vmatprep.subr.mxu0 0.0
    %214 = vmatpush1.msra.mxu0 %v197
    %215 = vmatprep.subr.mxu0 0.0
    %216 = vmatpush1.msra.mxu0 %v196
    %217 = vmatprep.subr.mxu0 0.0
    %218 = vmatpush1.msra.mxu0 %v195
    %219 = vmatprep.subr.mxu0 0.0
    %220 = vmatpush1.msra.mxu0 %v194
    %221 = vmatprep.subr.mxu0 0.0
    %222 = vmatpush1.msra.mxu0 %v193
    %223 = vmatprep.subr.mxu0 0.0
    %224 = vmatpush1.msra.mxu0 %v192
    %225 = vmatprep.subr.mxu0 0.0
    %226 = vmatpush1.msra.mxu0 %v191
    %227 = vmatprep.subr.mxu0 0.0
    %228 = vmatpush1.msra.mxu0 %v190
    %229 = vmatprep.subr.mxu0 0.0
    %230 = vmatpush1.msra.mxu0 %v189
    %231 = vmatprep.subr.mxu0 0.0
    %232 = vmatpush1.msra.mxu0 %v188
    %233 = vmatprep.subr.mxu0 0.0
    %234 = vmatpush1.msra.mxu0 %v187
    %235 = vmatprep.subr.mxu0 0.0
    %236 = vmatpush2.msra.mxu0 0.0
    %237 = vmatprep.subr.mxu0 0.0
    %238 = vmatpush2.msra.mxu0 0.0
    %239 = vmatprep.subr.mxu0 0.0
    %240 = vmatpush2.msra.mxu0 0.0
    %241 = vmatprep.subr.mxu0 0.0
    %242 = vmatpush2.msra.mxu0 0.0
    %243 = vmatprep.subr.mxu0 0.0
    %244 = vmatpush2.msra.mxu0 0.0
    %245 = vmatprep.subr.mxu0 0.0
    %246 = vmatpush2.msra.mxu0 0.0
    %247 = vmatprep.subr.mxu0 0.0
    %248 = vmatpush2.msra.mxu0 0.0
    %249 = vmatprep.subr.mxu0 0.0
    %250 = vmatpush2.msra.mxu0 0.0
    %251 = vmatprep.subr.mxu0 0.0
    %252 = vmatpush2.msra.mxu0 0.0
    %253 = vmatprep.subr.mxu0 0.0
    %254 = vmatpush2.msra.mxu0 0.0
    %255 = vmatprep.subr.mxu0 0.0
    %256 = vmatpush2.msra.mxu0 0.0
    %257 = vmatprep.subr.mxu0 0.0
    %258 = vmatpush2.msra.mxu0 0.0
    %259 = vmatprep.subr.mxu0 0.0
    %260 = vmatpush2.msra.mxu0 0.0
    %261 = vmatprep.subr.mxu0 0.0
    %262 = vmatpush2.msra.mxu0 0.0
    %263 = vmatprep.subr.mxu0 0.0
    %264 = vmatpush2.msra.mxu0 0.0
    %265 = vmatprep.subr.mxu0 0.0
    %266 = vmatpush2.msra.mxu0 0.0
    %267 = vmatprep.mubr.f32.mxu0 0.0
    %268 = vmatmul.mubr.f32.gmra.mxu0 %v183
    %v269 = vpop.f32.mrf.mxu0
    %v270 = vadd.f32 0.0, %v269
    %v271 = vpop.f32.mrf.mxu0
    %272 = vmatprep.mubr.f32.mxu0 0.0
    %273 = vmatmul.mubr.f32.gmra.mxu0 %v184
    %v274 = vpop.f32.mrf.mxu0
    %v275 = vadd.f32 0.0, %v274
    %v276 = vpop.f32.mrf.mxu0
    %277 = vdwg.mxu0
    %v278 = vadd.f32 %v185, %v270
    %v279 = vadd.f32 %v186, %v275
    %280 = vst [vmem:[#allocation8] sm:$0xff] %v278
    %281 = vst [vmem:[#allocation8 + $0x8] sm:$0xff] %v279
    // Predicated region
    $region38: #{tpu_custom_call.1} parent=1 // pred_check
      _
    $region39: #{tpu_custom_call.1} parent=1 // pred_check_branch
      %283 = sbr.rel (0) target = $region41
    $region40: #{tpu_custom_call.1} parent=1 // pred_region
      %s285 = ssub.s32 256, 256
      %286 = vsyncadd [#allocation4], %s285
      %s287 = sshll.u32 [#allocation8], 4
      %s288 = int_to_ptr.vmem [resolvable:$true] %s287
      %293 = dma.vmem_to_hbm [thread:$0]  %s288, 256, %s5, [#allocation4], 128, 128, 8
    $region41: #{tpu_custom_call.1} parent=1 // pred_fallthru
      _
    // Predicated region
    $region42: #{tpu_custom_call.1} parent=1 // pred_check
      _
    $region43: #{tpu_custom_call.1} parent=1 // pred_check_branch
      %295 = sbr.rel (0) target = $region45
    $region44: #{tpu_custom_call.1} parent=1 // pred_region
      %296 = dma.done [#allocation4], 256
    $region45: #{tpu_custom_call.1} parent=1 // pred_fallthru
      _
    %297 = vsyncpa [#allocation3], 1
    %298 = vsyncpa [#allocation6], 1
    %299 = vsyncpa [#allocation4], 1

</llo_original>
